<compile_context>
chip_gen: v7x
topology: tpu7x:2x2x1
jax: 0.10.0
libtpu: 0.0.40
codegen_flags: <defaults>
</compile_context>

<pallas_src>
import functools
import math

import jax
import jax.numpy as jnp
from jax import lax
from jax.experimental import pallas as pl
from jax.experimental.pallas import tpu as pltpu


def _derive_vmem_limit():
    """Per-generation VMEM cap: ~48 MiB on v7x (64 MiB/TC), ~96 MiB on v5e/v6e."""
    default = 48 * 1024 * 1024
    try:
        cap = int(pltpu.get_tpu_info().vmem_capacity_bytes)
    except Exception:
        return default
    return max(default, min(cap * 3 // 4, 96 * 1024 * 1024))


_VMEM_LIMIT = _derive_vmem_limit()


def _round_up(x, m):
    return (x + m - 1) // m * m


def _pick_m_tile(M, target=512, lo=128):
    """Multiple-of-8 M tile <= target minimizing zero-padding waste."""
    M8 = _round_up(M, 8)
    if M8 <= target:
        return M8
    best_t, best_pad = target, _round_up(M8, target)
    for t in range(target - 8, lo - 1, -8):
        p = _round_up(M8, t)
        if p < best_pad:
            best_pad, best_t = p, t
    return best_t


def _pick_q_tile(N, target=256):
    """Query-block tile: multiple-of-8 divisor of N <= target, else full extent."""
    if N <= target:
        return N
    for t in range(target, 7, -8):
        if N % t == 0:
            return t
    return N  # full-extent block is always layout-legal


# ----------------------------- projection matmul -----------------------------


def _matmul_bias_kernel(x_ref, w_ref, b_ref, o_ref):
    # Whole weight / bias are VMEM-resident (constant block index); no K-axis
    # reduction -> accumulate straight into the output tile (no scratch).
    acc = jnp.dot(x_ref[...], w_ref[...], preferred_element_type=jnp.float32)
    o_ref[...] = (acc + b_ref[...]).astype(o_ref.dtype)


def _pallas_matmul_bias(x2d, w, b, *, tm_target=512, compute_dtype=None):
    """x2d: (M, K), w: (K, Nout), b: (Nout,) -> (M, Nout) in x2d.dtype.

    Weight-resident: w and b are read from HBM exactly once; only M tiles
    stream.  M is zero-padded to an (8-aligned) multiple of the tile so every
    block satisfies the (8,128)/full-extent layout rule for any M (e.g. B*197).
    compute_dtype=jnp.bfloat16 casts x/w for the MXU on v6e/v7x (f32 accumulate).
    """
    M, K = x2d.shape
    Nout = w.shape[1]
    out_dtype = x2d.dtype
    if compute_dtype is not None:
        x2d = x2d.astype(compute_dtype)
        w = w.astype(compute_dtype)

    tm = _pick_m_tile(M, tm_target)
    M_pad = _round_up(M, tm)
    if M_pad != M:
        x2d = jnp.pad(x2d, ((0, M_pad - M), (0, 0)))

    # TODO(synk): for very large C (f32 weight > ~16 MiB) reintroduce K/N tiling;
    # at ViT-scale dims the full weight (+double buffer) fits comfortably.
    out = pl.pallas_call(
        _matmul_bias_kernel,
        out_shape=jax.ShapeDtypeStruct((M_pad, Nout), out_dtype),
        grid=(M_pad // tm,),
        in_specs=[
            pl.BlockSpec((tm, K), lambda i: (i, 0)),        # streamed activations
            pl.BlockSpec((K, Nout), lambda i: (0, 0)),      # VMEM-resident weight
            pl.BlockSpec((1, Nout), lambda i: (0, 0)),      # VMEM-resident bias
        ],
        out_specs=pl.BlockSpec((tm, Nout), lambda i: (i, 0)),
        compiler_params=pltpu.CompilerParams(
            dimension_semantics=("parallel",),
            vmem_limit_bytes=_VMEM_LIMIT,
        ),
    )(x2d, w, b.reshape(1, Nout).astype(jnp.float32))
    return out[:M] if M_pad != M else out


# ----------------------------- attention kernel ------------------------------


def _attention_kernel(q_ref, kv_ref, o_ref, *, num_heads, head_dim, scale):
    # q_ref : (1, tq, 3C) query-row slab for this (batch, q-block)
    # kv_ref: (1, N, 3C)  full-sequence slab for this batch (resident across q-blocks)
    # Columns are ordered (3, H, D) exactly like PyTorch's reshape(B,N,3,H,D),
    # so head h's q/k/v live at offsets h*D, C+h*D, 2C+h*D.
    C = num_heads * head_dim
    for h in range(num_heads):  # static unroll; one head live at a time
        lo = h * head_dim
        q = q_ref[0, :, lo:lo + head_dim] * scale                      # (tq, D)
        k = kv_ref[0, :, C + lo:C + lo + head_dim]                     # (N, D)
        v = kv_ref[0, :, 2 * C + lo:2 * C + lo + head_dim]             # (N, D)
        # q @ k^T via dot_general contracting last dims (no materialized k.T).
        s = lax.dot_general(q, k, (((1,), (1,)), ((), ())),
                            preferred_element_type=jnp.float32)        # (tq, N)
        m = jnp.max(s, axis=-1, keepdims=True)
        p = jnp.exp(s - m)
        p = p * pl.reciprocal(jnp.sum(p, axis=-1, keepdims=True), approx=True)
        o = jnp.dot(p.astype(v.dtype), v,
                    preferred_element_type=jnp.float32)                # (tq, D)
        # Per-head store straight into the output block (no concatenate).
        o_ref[0, :, lo:lo + head_dim] = o.astype(o_ref.dtype)
    # TODO(synk): for N >~ 2K switch to flash-style KV tiling with online
    # softmax, and pack head pairs (D=64 -> 128 lanes) for lane-aligned slices.


def _pallas_attention(qkv, B, N, num_heads, head_dim, scale, out_dtype):
    C = num_heads * head_dim
    qkv3 = qkv.reshape(B, N, 3 * C)  # contiguous reshape: free, no transpose
    tq = _pick_q_tile(N)
    kernel = functools.partial(_attention_kernel, num_heads=num_heads,
                               head_dim=head_dim, scale=scale)
    return pl.pallas_call(
        kernel,
        out_shape=jax.ShapeDtypeStruct((B, N, C), out_dtype),
        grid=(B, N // tq),
        in_specs=[
            pl.BlockSpec((1, tq, 3 * C), lambda b, qi: (b, qi, 0)),  # query rows
            pl.BlockSpec((1, N, 3 * C), lambda b, qi: (b, 0, 0)),    # full K/V slab
        ],
        out_specs=pl.BlockSpec((1, tq, C), lambda b, qi: (b, qi, 0)),
        compiler_params=pltpu.CompilerParams(
            dimension_semantics=("parallel", "parallel"),
            vmem_limit_bytes=_VMEM_LIMIT,
        ),
    )(qkv3, qkv3)


# ----------------------------- forward ---------------------------------------


def self_attention_forward(x, params, num_heads, matmul_dtype=None):
    """Pallas implementation of SelfAttention.forward.

    x: (B, N, C).  params: 'w_qkv' (C,3C), 'b_qkv' (3C,), 'w_proj' (C,C), 'b_proj' (C,).
    matmul_dtype=jnp.bfloat16 enables bf16 MXU projections (f32 accumulate) on
    v6e/v7x; the demo keeps f32 for tight parity with the reference.
    """
    B, N, C = x.shape
    D = C // num_heads
    scale = D ** (-0.5)

    # qkv projection (weight-resident Pallas matmul)
    qkv = _pallas_matmul_bias(x.reshape(B * N, C), params["w_qkv"],
                              params["b_qkv"], compute_dtype=matmul_dtype)   # (B*N, 3C)

    # fused attention core (head split/merge inside the kernel, no HBM transposes)
    o = _pallas_attention(qkv, B, N, num_heads, D, scale, x.dtype)           # (B, N, C)
    # attn_drop is identity (p=0.0)

    # output projection; proj_drop is identity (p=0.0)
    y = _pallas_matmul_bias(o.reshape(B * N, C), params["w_proj"],
                            params["b_proj"], compute_dtype=matmul_dtype)    # (B*N, C)
    return y.reshape(B, N, C)


# ----------------------------- reference --------------------------------------


def self_attention_reference(x, params, num_heads):
    B, N, C = x.shape
    H = num_heads
    D = C // H
    scale = D ** (-0.5)
    qkv = x @ params["w_qkv"] + params["b_qkv"]
    qkv = qkv.reshape(B, N, 3, H, D).transpose(2, 0, 3, 1, 4)
    q, k, v = qkv[0], qkv[1], qkv[2]
    attn = jnp.einsum("bhnd,bhmd->bhnm", q, k) * scale
    attn = jax.nn.softmax(attn, axis=-1)
    o = jnp.einsum("bhnm,bhmd->bhnd", attn, v)
    o = o.transpose(0, 2, 1, 3).reshape(B, N, C)
    return (o @ params["w_proj"] + params["b_proj"]).reshape(B, N, C)


# ----------------------------- main -------------------------------------------


if __name__ == "__main__":
    # Small shapes consistent with the module: dim=32, num_heads=8 -> head_dim=4.
    B, N, C = 2, 8, 32
    num_heads = 8

    key = jax.random.PRNGKey(0)
    kx, kq, kp, kb = jax.random.split(key, 4)

    x = jax.random.normal(kx, (B, N, C), dtype=jnp.float32)

    # Deterministic synthetic parameters (nn.Linear-like uniform init).
    bound = 1.0 / math.sqrt(C)
    params = {
        # qkv_bias=False in the module default -> zero bias.
        "w_qkv": jax.random.uniform(kq, (C, 3 * C), jnp.float32, -bound, bound),
        "b_qkv": jnp.zeros((3 * C,), jnp.float32),
        "w_proj": jax.random.uniform(kp, (C, C), jnp.float32, -bound, bound),
        "b_proj": jax.random.uniform(kb, (C,), jnp.float32, -bound, bound),
    }

    out = self_attention_forward(x, params, num_heads)
    out = jax.block_until_ready(out)

    ref = self_attention_reference(x, params, num_heads)
    assert out.shape == (B, N, C)
    # Tolerance loosened slightly (2e-3) for the approx EUP reciprocal in softmax.
    assert jnp.allclose(out, ref, atol=2e-3, rtol=2e-3), "mismatch vs reference"

    print("KERNEL_OK")
</pallas_src>

<mosaic_0001>
module attributes {stable_mosaic.version = 11 : i64} {
  func.func @_matmul_bias_kernel(%arg0: i32, %arg1: memref<16x32xf32, #tpu.memory_space<vmem>>, %arg2: memref<32x96xf32, #tpu.memory_space<vmem>>, %arg3: memref<1x96xf32, #tpu.memory_space<vmem>>, %arg4: memref<16x96xf32, #tpu.memory_space<vmem>>) attributes {dimension_semantics = [#tpu.dimension_semantics<parallel>], iteration_bounds = array<i64: 1>, scalar_prefetch = 0 : i64, scratch_operands = 0 : i64, tpu.core_type = #tpu.core_type<tc>, window_params = [{transform_indices = @transform_0, window_bounds = array<i64: 16, 32>}, {pipeline_mode = #tpu.pipeline_mode<synchronous>, transform_indices = @transform_1, window_bounds = array<i64: 32, 96>}, {pipeline_mode = #tpu.pipeline_mode<synchronous>, transform_indices = @transform_2, window_bounds = array<i64: 1, 96>}, {transform_indices = @transform_3, window_bounds = array<i64: 16, 96>}]} {
    %c0 = arith.constant 0 : index
    %c0_0 = arith.constant 0 : index
    %0 = vector.load %arg1[%c0, %c0_0] : memref<16x32xf32, #tpu.memory_space<vmem>>, vector<16x32xf32>
    %c0_1 = arith.constant 0 : index
    %c0_2 = arith.constant 0 : index
    %1 = vector.load %arg2[%c0_1, %c0_2] : memref<32x96xf32, #tpu.memory_space<vmem>>, vector<32x96xf32>
    %cst = arith.constant dense<0.000000e+00> : vector<16x96xf32>
    %2 = tpu.matmul %0, %1, %cst {dimension_numbers = #tpu.dot_dimension_numbers<[1], [0], [0], [1], [0, 0, 1, 1], [], []>} : vector<16x32xf32>, vector<32x96xf32>, vector<16x96xf32> -> vector<16x96xf32>
    %c0_3 = arith.constant 0 : index
    %c0_4 = arith.constant 0 : index
    %3 = vector.load %arg3[%c0_3, %c0_4] : memref<1x96xf32, #tpu.memory_space<vmem>>, vector<1x96xf32>
    %4 = vector.broadcast %3 : vector<1x96xf32> to vector<16x96xf32>
    %5 = arith.addf %2, %4 : vector<16x96xf32>
    %c0_5 = arith.constant 0 : index
    %c0_6 = arith.constant 0 : index
    %6 = vector.load %arg4[%c0_5, %c0_6] : memref<16x96xf32, #tpu.memory_space<vmem>>, vector<16x96xf32>
    tpu.vector_store %arg4[%c0_5, %c0_6], %5 {strides = array<i32>} : memref<16x96xf32, #tpu.memory_space<vmem>>, vector<16x96xf32>,
    return
  }
  func.func @transform_0(%arg0: i32) -> (i32, i32) {
    %c0_i32 = arith.constant 0 : i32
    %c0_i32_0 = arith.constant 0 : i32
    return %arg0, %c0_i32 : i32, i32
  }
  func.func @transform_1(%arg0: i32) -> (i32, i32) {
    %c0_i32 = arith.constant 0 : i32
    %c0_i32_0 = arith.constant 0 : i32
    %c0_i32_1 = arith.constant 0 : i32
    return %c0_i32, %c0_i32_0 : i32, i32
  }
  func.func @transform_2(%arg0: i32) -> (i32, i32) {
    %c0_i32 = arith.constant 0 : i32
    %c0_i32_0 = arith.constant 0 : i32
    %c0_i32_1 = arith.constant 0 : i32
    return %c0_i32, %c0_i32_0 : i32, i32
  }
  func.func @transform_3(%arg0: i32) -> (i32, i32) {
    %c0_i32 = arith.constant 0 : i32
    %c0_i32_0 = arith.constant 0 : i32
    return %arg0, %c0_i32 : i32, i32
  }
}

</mosaic_0001>

<llo_original>
// kernel: tpu_custom_call.1
$region0: #{tpu_custom_call.1}
  #allocation0 [shape = 'u32[]', space=smem, size = 0x4, offset = 0x4, fixed_abs, tag = 'smem constant byte address 0x4 - core index']
  #allocation1 [shape = 'u32[144,128]{1,0:T(1,128)}', space=vmem, size = 0x12000, scoped, tag = 'internal scratch']
  %s0 = inlined_call_operand.hbm [shape: f32[16,32], index: 0, kind: input, shape index: {}]
  %s1 = inlined_call_operand.hbm [shape: f32[32,96], index: 1, kind: input, shape index: {}]
  %s2 = inlined_call_operand.vmem [shape: f32[1,96], index: 2, kind: input, shape index: {}]
  %s3 = inlined_call_operand.hbm [shape: f32[16,96], index: 3, kind: output, shape index: {}]
  %s4 = sld [smem:[#allocation0]]
  $region30: #{tpu_custom_call.1} parent=0
    _
  %s6 = ssub.s32 1, %s4
  %s7 = scalar_select 0, %s6, %s4
  $region1: #{tpu_custom_call.1} parent=0
    #allocation2 [shape = 'u8[8192]{0}', space=vmem, size = 0x2000, scoped, tag = 'input window, operand 0, single buffered']
    #allocation3 [shape = 's32[1]{0}', space=sflag, size = 0x4, scoped, tag = 'scoped memory for tpu_custom_call.1']
    #allocation4 [shape = 's32[1]{0}', space=sflag, size = 0x4, scoped, tag = 'scoped memory for tpu_custom_call.1']
    #allocation5 [shape = 'u8[16384]{0}', space=vmem, size = 0x4000, scoped, tag = 'input window, operand 1, single buffered']
    #allocation6 [shape = 's32[1]{0}', space=sflag, size = 0x4, scoped, tag = 'scoped memory for tpu_custom_call.1']
    #allocation7 [shape = 'u8[8192]{0}', space=vmem, size = 0x2000, scoped, tag = 'output window, operand 0, single buffered']
    %8 = vsyncpa [#allocation3], 0
    %9 = vsyncpa [#allocation6], 0
    %10 = vsyncpa [#allocation4], 0
    // Predicated region
    $region2: #{tpu_custom_call.1} parent=1 // pred_check
      _
    $region3: #{tpu_custom_call.1} parent=1 // pred_check_branch
      %12 = sbr.rel (0) target = $region5
    $region4: #{tpu_custom_call.1} parent=1 // pred_region
      %s14 = ssub.s32 256, 256
      %15 = vsyncadd [#allocation3], %s14
      %s16 = sshll.u32 [#allocation2], 4
      %s17 = int_to_ptr.vmem [resolvable:$true] %s16
      %22 = dma.hbm_to_vmem [thread:$0]  %s0, 256, %s17, [#allocation3], 128, 128, 8
    $region5: #{tpu_custom_call.1} parent=1 // pred_fallthru
      _
    // Predicated region
    $region6: #{tpu_custom_call.1} parent=1 // pred_check
      _
    $region7: #{tpu_custom_call.1} parent=1 // pred_check_branch
      %24 = sbr.rel (0) target = $region9
    $region8: #{tpu_custom_call.1} parent=1 // pred_region
      %s26 = ssub.s32 512, 512
      %27 = vsyncadd [#allocation6], %s26
      %s28 = sshll.u32 [#allocation5], 4
      %s29 = int_to_ptr.vmem [resolvable:$true] %s28
      %34 = dma.hbm_to_vmem [thread:$0]  %s1, 512, %s29, [#allocation6], 128, 128, 8
    $region9: #{tpu_custom_call.1} parent=1 // pred_fallthru
      _
    // Predicated region
    $region10: #{tpu_custom_call.1} parent=1 // pred_check
      _
    $region11: #{tpu_custom_call.1} parent=1 // pred_check_branch
      %36 = sbr.rel (0) target = $region13
    $region12: #{tpu_custom_call.1} parent=1 // pred_region
      _
    $region13: #{tpu_custom_call.1} parent=1 // pred_fallthru
      _
    // Predicated region
    $region14: #{tpu_custom_call.1} parent=1 // pred_check
      _
    $region15: #{tpu_custom_call.1} parent=1 // pred_check_branch
      %38 = sbr.rel (0) target = $region17
    $region16: #{tpu_custom_call.1} parent=1 // pred_region
      %39 = dma.done [#allocation3], 256
    $region17: #{tpu_custom_call.1} parent=1 // pred_fallthru
      _
    // Predicated region
    $region18: #{tpu_custom_call.1} parent=1 // pred_check
      _
    $region19: #{tpu_custom_call.1} parent=1 // pred_check_branch
      %41 = sbr.rel (0) target = $region21
    $region20: #{tpu_custom_call.1} parent=1 // pred_region
      %42 = dma.done [#allocation6], 512
    $region21: #{tpu_custom_call.1} parent=1 // pred_fallthru
      _
    %v43 = vld [vmem:[#allocation2] sm:$0xff]
    %v44 = vld [vmem:[#allocation2 + $0x8] sm:$0xff]
    %v45 = vld [vmem:[#allocation5] sm:$0xff]
    %v46 = vld [vmem:[#allocation5 + $0x8] sm:$0xff]
    %v47 = vld [vmem:[#allocation5 + $0x10] sm:$0xff]
    %v48 = vld [vmem:[#allocation5 + $0x18] sm:$0xff]
    %v49 = vld [vmem:[%s2] sm:$0x1]
    %v51 = vlaneseq
    %v52 = vshrl.u32 %v51, 7
    %v53 = vsub.s32 0, %v52
    %v54 = vrot.slane %v49, %v53
    %vm56 = vcmask 261120
    %v58 = vsel %vm56, %v43, 0
    %v61 = vsel %vm56, %v44, 0
    %63 = vmatprep.subr.mxu0 0.0
    %64 = vmatpush1.msra.mxu0 %v45
    %65 = vmatprep.subr.mxu0 0.0
    %66 = vmatpush1.msra.mxu0 %v46
    %67 = vmatprep.subr.mxu0 0.0
    %68 = vmatpush1.msra.mxu0 %v47
    %69 = vmatprep.subr.mxu0 0.0
    %70 = vmatpush1.msra.mxu0 %v48
    %71 = vmatprep.subr.mxu0 0.0
    %72 = vmatpush1.msra.mxu0 0.0
    %73 = vmatprep.subr.mxu0 0.0
    %74 = vmatpush1.msra.mxu0 0.0
    %75 = vmatprep.subr.mxu0 0.0
    %76 = vmatpush1.msra.mxu0 0.0
    %77 = vmatprep.subr.mxu0 0.0
    %78 = vmatpush1.msra.mxu0 0.0
    %79 = vmatprep.subr.mxu0 0.0
    %80 = vmatpush1.msra.mxu0 0.0
    %81 = vmatprep.subr.mxu0 0.0
    %82 = vmatpush1.msra.mxu0 0.0
    %83 = vmatprep.subr.mxu0 0.0
    %84 = vmatpush1.msra.mxu0 0.0
    %85 = vmatprep.subr.mxu0 0.0
    %86 = vmatpush1.msra.mxu0 0.0
    %87 = vmatprep.subr.mxu0 0.0
    %88 = vmatpush1.msra.mxu0 0.0
    %89 = vmatprep.subr.mxu0 0.0
    %90 = vmatpush1.msra.mxu0 0.0
    %91 = vmatprep.subr.mxu0 0.0
    %92 = vmatpush1.msra.mxu0 0.0
    %93 = vmatprep.subr.mxu0 0.0
    %94 = vmatpush1.msra.mxu0 0.0
    %95 = vmatprep.subr.mxu0 0.0
    %96 = vmatpush1.msra.mxu0 0.0
    %97 = vmatprep.subr.mxu0 0.0
    %98 = vmatpush1.msra.mxu0 0.0
    %99 = vmatprep.subr.mxu0 0.0
    %100 = vmatpush1.msra.mxu0 0.0
    %101 = vmatprep.subr.mxu0 0.0
    %102 = vmatpush1.msra.mxu0 0.0
    %103 = vmatprep.subr.mxu0 0.0
    %104 = vmatpush1.msra.mxu0 0.0
    %105 = vmatprep.subr.mxu0 0.0
    %106 = vmatpush1.msra.mxu0 0.0
    %107 = vmatprep.subr.mxu0 0.0
    %108 = vmatpush1.msra.mxu0 0.0
    %109 = vmatprep.subr.mxu0 0.0
    %110 = vmatpush1.msra.mxu0 0.0
    %111 = vmatprep.subr.mxu0 0.0
    %112 = vmatpush1.msra.mxu0 0.0
    %113 = vmatprep.subr.mxu0 0.0
    %114 = vmatpush1.msra.mxu0 0.0
    %115 = vmatprep.subr.mxu0 0.0
    %116 = vmatpush1.msra.mxu0 0.0
    %117 = vmatprep.subr.mxu0 0.0
    %118 = vmatpush1.msra.mxu0 0.0
    %119 = vmatprep.subr.mxu0 0.0
    %120 = vmatpush1.msra.mxu0 0.0
    %121 = vmatprep.subr.mxu0 0.0
    %122 = vmatpush1.msra.mxu0 0.0
    %123 = vmatprep.subr.mxu0 0.0
    %124 = vmatpush1.msra.mxu0 0.0
    %125 = vmatprep.subr.mxu0 0.0
    %126 = vmatpush1.msra.mxu0 0.0
    %127 = vmatprep.mubr.f32.mxu0 0.0
    %128 = vmatmul.mubr.f32.gmra.mrb[0].mxu0 %v58
    %v129 = vpop.f32.mrb[0].mxu0
    %v130 = vadd.f32 %v54, %v129
    %v131 = vpop.f32.mrb[0].mxu0
    %132 = vmatprep.mubr.f32.mxu0 0.0
    %133 = vmatmul.mubr.f32.gmra.mrb[0].mxu0 %v61
    %v134 = vpop.f32.mrb[0].mxu0
    %v135 = vadd.f32 %v54, %v134
    %v136 = vpop.f32.mrb[0].mxu0
    %137 = vdwg.mxu0
    %vm138 = vcmask 785408
    %139 = vst.msk [vmem:[#allocation7] sm:$0xff] %vm138, %v130
    %140 = vst.msk [vmem:[#allocation7 + $0x8] sm:$0xff] %vm138, %v135
    // Predicated region
    $region22: #{tpu_custom_call.1} parent=1 // pred_check
      _
    $region23: #{tpu_custom_call.1} parent=1 // pred_check_branch
      %142 = sbr.rel (0) target = $region25
    $region24: #{tpu_custom_call.1} parent=1 // pred_region
      %s144 = ssub.s32 256, 256
      %145 = vsyncadd [#allocation4], %s144
      %s146 = sshll.u32 [#allocation7], 4
      %s147 = int_to_ptr.vmem [resolvable:$true] %s146
      %152 = dma.vmem_to_hbm [thread:$0]  %s147, 256, %s3, [#allocation4], 128, 128, 8
    $region25: #{tpu_custom_call.1} parent=1 // pred_fallthru
      _
    // Predicated region
    $region26: #{tpu_custom_call.1} parent=1 // pred_check
      _
    $region27: #{tpu_custom_call.1} parent=1 // pred_check_branch
      %154 = sbr.rel (0) target = $region29
    $region28: #{tpu_custom_call.1} parent=1 // pred_region
      %155 = dma.done [#allocation4], 256
    $region29: #{tpu_custom_call.1} parent=1 // pred_fallthru
      _
    %156 = vsyncpa [#allocation3], 1
    %157 = vsyncpa [#allocation6], 1
    %158 = vsyncpa [#allocation4], 1

</llo_original>
